<compile_context>
chip_gen: v6e
topology: v6e:2x2x1
jax: 0.10.0
libtpu: 0.0.40
codegen_flags: <defaults>
</compile_context>

<pallas_src>
import functools

import jax
import jax.numpy as jnp
from jax.experimental import pallas as pl
from jax.experimental.pallas import tpu as pltpu


# ----------------------------------------------------------------------------
# Deterministic block-sparse mask (stands in for the `blocksparse(...)` helper
# of the original module: prune the lowest-L1-norm blocks of shape
# block_sizes=(bo, bc) over the (out_channels, in_channels) plane, keeping the
# full KHxKW spatial kernel per block). shuffle=False equivalent.
# Note: argsort tie-breaking may differ from torch's sort for equal scores.
# ----------------------------------------------------------------------------
def blocksparse_mask(weight_oihw, block_sizes, pruning_rate):
    O, C, KH, KW = weight_oihw.shape
    bo, bc = block_sizes
    assert O % bo == 0 and C % bc == 0
    wb = weight_oihw.reshape(O // bo, bo, C // bc, bc, KH, KW)
    scores = jnp.sum(jnp.abs(wb), axis=(1, 3, 4, 5)).reshape(-1)
    n_blocks = scores.shape[0]
    n_prune = int(round(pruning_rate * n_blocks))
    order = jnp.argsort(scores)
    keep = jnp.ones((n_blocks,), dtype=bool).at[order[:n_prune]].set(False)
    keep = keep.reshape(O // bo, C // bc)
    mask = jnp.broadcast_to(
        keep[:, None, :, None, None, None],
        (O // bo, bo, C // bc, bc, KH, KW),
    ).reshape(O, C, KH, KW)
    return mask.astype(weight_oihw.dtype)


# ----------------------------------------------------------------------------
# Kernel A (small C): im2col patch in VMEM, one MXU matmul per grid step.
#   x_ref     : (1, C_pad, Lx)     flattened (phase, row, col) padded input
#   w_ref     : (TO, KH*KW*C_pad)  mask-fused weight tile (compute dtype)
#   b_ref     : (TO, 1)            f32 bias tile
#   o_ref     : (1, TO, Lq)        lane-dense output tile, Lq = H_out*Wq
#   patch_ref : (KH*KW*C_pad, Lq)  VMEM scratch, persists across the o axis
# ----------------------------------------------------------------------------
def _bsconv_im2col_kernel(x_ref, w_ref, b_ref, o_ref, patch_ref,
                          *, taps, C_pad, Lq):
    # The patch depends only on the batch (n) grid axis -> build it only on the
    # first o-tile step.  The o axis is "arbitrary" so this gate is safe.
    @pl.when(pl.program_id(1) == 0)
    def _build_patch():
        for t, off in enumerate(taps):
            # Contiguous lane slice; row block is sublane-aligned (C_pad).
            patch_ref[t * C_pad:(t + 1) * C_pad, :] = x_ref[0, :, pl.ds(off, Lq)]

    acc = jnp.dot(w_ref[...], patch_ref[...],
                  preferred_element_type=jnp.float32)          # (TO, Lq) f32
    acc = acc + b_ref[...]                                     # (TO,1) broadcast
    o_ref[...] = acc[None].astype(o_ref.dtype)


# ----------------------------------------------------------------------------
# Kernel B (C_pad >= 128): no im2col scratch -- accumulate KH*KW tap matmuls
# directly from shifted lane slices of x (K = C_pad already fills the MXU).
# ----------------------------------------------------------------------------
def _bsconv_tap_kernel(x_ref, w_ref, b_ref, o_ref, *, taps, C_pad, Lq):
    acc = None
    for t, off in enumerate(taps):
        part = x_ref[0, :, pl.ds(off, Lq)]                     # (C_pad, Lq)
        contrib = jnp.dot(w_ref[:, t * C_pad:(t + 1) * C_pad], part,
                          preferred_element_type=jnp.float32)
        acc = contrib if acc is None else acc + contrib
    acc = acc + b_ref[...]
    o_ref[...] = acc[None].astype(o_ref.dtype)


def _as_pair(v):
    return (v, v) if isinstance(v, int) else tuple(v)


# ----------------------------------------------------------------------------
# Wrapper: NCHW/OIHW in, NCHW out (matches F.conv2d semantics).
# ----------------------------------------------------------------------------
def blocksparse_conv2d(x_nchw, weight_oihw, mask_oihw, bias,
                       stride=1, padding=0, dilation=1,
                       o_tile=None, compute_dtype=jnp.bfloat16):
    N, C, H, W = x_nchw.shape
    O, Cw, KH, KW = weight_oihw.shape
    assert Cw == C, "groups > 1 not supported"   # TODO(synk): grouped conv
    sh, sw = _as_pair(stride)
    ph, pw = _as_pair(padding)
    dh, dw = _as_pair(dilation)

    H_out = (H + 2 * ph - dh * (KH - 1) - 1) // sh + 1
    W_out = (W + 2 * pw - dw * (KW - 1) - 1) // sw + 1
    assert H_out > 0 and W_out > 0
    Hp, Wp = H + 2 * ph, W + 2 * pw

    # Pad channels to a sublane multiple of the compute dtype so every patch
    # store / tap slice is tile-aligned (MXU zeros in padded K rows are free).
    c_itemsize = jnp.dtype(compute_dtype).itemsize
    sub = 8 * (4 // c_itemsize)                       # 8 for f32, 16 for bf16
    C_pad = ((C + sub - 1) // sub) * sub

    # Phase-decomposed flat layout: sh*sw phases, each (Hq_blk, Wq); tap
    # (kh, kw) becomes a *contiguous* lane slice at a static offset.
    rq_max = ((KH - 1) * dh) // sh
    cq_max = ((KW - 1) * dw) // sw
    Hq = H_out + rq_max
    Wq = W_out + cq_max
    extra_rows = (cq_max + Wq - 1) // Wq              # 0 or 1 tail rows
    Hq_blk = Hq + extra_rows
    P = sh * sw
    Lq = H_out * Wq                                   # lane-dense output width
    Lx = P * Hq_blk * Wq

    taps = []
    for kh in range(KH):
        for kw in range(KW):
            a, rq = (kh * dh) % sh, (kh * dh) // sh
            b_, cq = (kw * dw) % sw, (kw * dw) // sw
            taps.append(((a * sw + b_) * Hq_blk + rq) * Wq + cq)
    taps = tuple(taps)
    assert max(taps) + Lq <= Lx

    # Build the flattened input.  stride==1: ONE jnp.pad (tail rows folded in).
    if P == 1:
        x_flat = jnp.pad(x_nchw, ((0, 0), (0, C_pad - C),
                                  (ph, ph + extra_rows), (pw, pw)))
        x_flat = x_flat.astype(compute_dtype).reshape(N, C_pad, Lx)
    else:
        x_pad = jnp.pad(x_nchw, ((0, 0), (0, C_pad - C), (ph, ph), (pw, pw)))
        phases = []
        for a in range(sh):
            for b_ in range(sw):
                s = x_pad[:, :, a::sh, b_::sw][:, :, :Hq_blk, :Wq]
                drows, dcols = Hq_blk - s.shape[2], Wq - s.shape[3]
                if drows or dcols:
                    s = jnp.pad(s, ((0, 0), (0, 0), (0, drows), (0, dcols)))
                phases.append(s)
        x_flat = jnp.stack(phases, axis=2).astype(compute_dtype)
        x_flat = x_flat.reshape(N, C_pad, Lx)

    # Fuse the block mask into the weight once; contraction ordered
    # (kh, kw, c_pad) to match the patch / tap layout; zero-pad extra channels.
    w_m = jnp.transpose(weight_oihw * mask_oihw, (0, 2, 3, 1))   # (O,KH,KW,C)
    if C_pad > C:
        w_m = jnp.pad(w_m, ((0, 0), (0, 0), (0, 0), (0, C_pad - C)))
    K = KH * KW * C_pad
    w_flat = w_m.reshape(O, K).astype(compute_dtype)

    if bias is None:
        bias = jnp.zeros((O,), dtype=jnp.float32)
    b2 = bias.astype(jnp.float32).reshape(O, 1)

    # Output-channel tile size (full O for small channel counts).
    if o_tile is None:
        o_tile = O
        for cand in (256, 128):
            if O % cand == 0:
                o_tile = cand
                break
    assert O % o_tile == 0 and (o_tile == O or o_tile % sub == 0)

    use_im2col = C_pad < 128
    if use_im2col:
        kernel = functools.partial(_bsconv_im2col_kernel,
                                   taps=taps, C_pad=C_pad, Lq=Lq)
        scratch_shapes = [pltpu.VMEM((K, Lq), compute_dtype)]
    else:
        kernel = functools.partial(_bsconv_tap_kernel,
                                   taps=taps, C_pad=C_pad, Lq=Lq)
        scratch_shapes = []

    # Explicit scoped-VMEM limit from the actual block sizes (x2 double buf).
    o_itemsize = jnp.dtype(x_nchw.dtype).itemsize
    vmem_bytes = (2 * C_pad * Lx * c_itemsize
                  + 2 * o_tile * K * c_itemsize
                  + 2 * o_tile * 4
                  + 2 * o_tile * Lq * o_itemsize)
    if use_im2col:
        vmem_bytes += K * Lq * c_itemsize
    vmem_limit = int(min(max(vmem_bytes * 3 // 2 + (2 << 20), 16 << 20),
                         64 << 20))

    out_flat = pl.pallas_call(
        kernel,
        out_shape=jax.ShapeDtypeStruct((N, O, Lq), x_nchw.dtype),
        grid_spec=pltpu.PrefetchScalarGridSpec(
            num_scalar_prefetch=0,
            grid=(N, O // o_tile),
            in_specs=[
                pl.BlockSpec((1, C_pad, Lx), lambda n, o: (n, 0, 0)),
                pl.BlockSpec((o_tile, K), lambda n, o: (o, 0)),
                pl.BlockSpec((o_tile, 1), lambda n, o: (o, 0)),
            ],
            out_specs=pl.BlockSpec((1, o_tile, Lq), lambda n, o: (n, o, 0)),
            scratch_shapes=scratch_shapes,
        ),
        compiler_params=pltpu.CompilerParams(
            dimension_semantics=("parallel", "arbitrary"),
            vmem_limit_bytes=vmem_limit),
    )(x_flat, w_flat, b2)

    # NCHW output: restore (H_out, Wq) from the flat lane axis, drop the
    # don't-care columns.  No transpose anywhere.
    out = out_flat.reshape(N, O, H_out, Wq)
    if Wq != W_out:
        out = out[..., :W_out]
    return out


if __name__ == "__main__":
    key = jax.random.PRNGKey(0)

    def run_case(k, N, C, H, W, O, KH, KW, stride, padding, dilation):
        k_x, k_w, k_b = jax.random.split(k, 3)
        x = jax.random.normal(k_x, (N, C, H, W), dtype=jnp.float32)
        w = jax.random.normal(k_w, (O, C, KH, KW), dtype=jnp.float32) * 0.1
        b = jax.random.normal(k_b, (O,), dtype=jnp.float32) * 0.1
        mask = blocksparse_mask(w, block_sizes=(2, 2), pruning_rate=0.5)

        out = blocksparse_conv2d(x, w, mask, b, stride=stride,
                                 padding=padding, dilation=dilation)
        out = jax.block_until_ready(out)

        # Reference with the same bf16-input / f32-accumulate arithmetic the
        # kernel uses (the only intended deviation from the f32 module).
        ref = jax.lax.conv_general_dilated(
            x.astype(jnp.bfloat16), (w * mask).astype(jnp.bfloat16),
            window_strides=(stride, stride),
            padding=((padding, padding), (padding, padding)),
            rhs_dilation=(dilation, dilation),
            dimension_numbers=("NCHW", "OIHW", "NCHW"),
            preferred_element_type=jnp.float32,
        ) + b.reshape(1, O, 1, 1)

        assert out.shape == ref.shape
        assert jnp.allclose(out, ref, atol=1e-2, rtol=1e-2), (
            float(jnp.max(jnp.abs(out - ref))))

    keys = jax.random.split(key, 4)
    # Main demo: Conv2d(4, 8, kernel_size=3, stride=1, padding=1, bias=True),
    # block_sizes=(2, 2), pruning_rate=0.5.
    run_case(keys[0], N=2, C=4, H=16, W=16, O=8, KH=3, KW=3,
             stride=1, padding=1, dilation=1)
    # stride=2 exercises the phase-decomposed layout (no lane-strided slices).
    run_case(keys[1], N=1, C=4, H=16, W=16, O=8, KH=3, KW=3,
             stride=2, padding=1, dilation=1)
    # dilation=2.
    run_case(keys[2], N=1, C=4, H=16, W=16, O=8, KH=3, KW=3,
             stride=1, padding=2, dilation=2)
    # Wide-channel layer exercises the per-tap (no-im2col) path.
    run_case(keys[3], N=1, C=128, H=8, W=8, O=128, KH=3, KW=3,
             stride=1, padding=1, dilation=1)

    print("KERNEL_OK")
</pallas_src>

<mosaic_0001>
module attributes {stable_mosaic.version = 11 : i64} {
  func.func @_bsconv_im2col_kernel(%arg0: i32, %arg1: i32, %arg2: memref<1x16x342xbf16, #tpu.memory_space<vmem>>, %arg3: memref<8x144xbf16, #tpu.memory_space<vmem>>, %arg4: memref<8x1xf32, #tpu.memory_space<vmem>>, %arg5: memref<1x8x288xf32, #tpu.memory_space<vmem>>, %arg6: memref<144x288xbf16, #tpu.memory_space<vmem>>) attributes {dimension_semantics = [#tpu.dimension_semantics<parallel>, #tpu.dimension_semantics<arbitrary>], iteration_bounds = array<i64: 2, 1>, scalar_prefetch = 0 : i64, scratch_operands = 1 : i64, tpu.core_type = #tpu.core_type<tc>, window_params = [{transform_indices = @transform_0, window_bounds = array<i64: 1, 16, 342>}, {transform_indices = @transform_1, window_bounds = array<i64: 8, 144>}, {transform_indices = @transform_2, window_bounds = array<i64: 8, 1>}, {transform_indices = @transform_3, window_bounds = array<i64: 1, 8, 288>}]} {
    %c0_i32 = arith.constant 0 : i32
    %0 = arith.cmpi eq, %arg1, %c0_i32 : i32
    %1 = arith.extui %0 : i1 to i32
    %c0_i32_0 = arith.constant 0 : i32
    %2 = arith.cmpi ne, %1, %c0_i32_0 : i32
    scf.if %2 {
      %c0_9 = arith.constant 0 : index
      %c0_10 = arith.constant 0 : index
      %c0_11 = arith.constant 0 : index
      %11 = vector.load %arg2[%c0_9, %c0_10, %c0_11] : memref<1x16x342xbf16, #tpu.memory_space<vmem>>, vector<1x16x288xbf16>
      %12 = vector.shape_cast %11 : vector<1x16x288xbf16> to vector<16x288xbf16>
      %c0_12 = arith.constant 0 : index
      %c0_13 = arith.constant 0 : index
      %13 = vector.load %arg6[%c0_12, %c0_13] : memref<144x288xbf16, #tpu.memory_space<vmem>>, vector<16x288xbf16>
      tpu.vector_store %arg6[%c0_12, %c0_13], %12 {strides = array<i32>} : memref<144x288xbf16, #tpu.memory_space<vmem>>, vector<16x288xbf16>,
      %c0_14 = arith.constant 0 : index
      %c0_15 = arith.constant 0 : index
      %c1 = arith.constant 1 : index
      %14 = vector.load %arg2[%c0_14, %c0_15, %c1] : memref<1x16x342xbf16, #tpu.memory_space<vmem>>, vector<1x16x288xbf16>
      %15 = vector.shape_cast %14 : vector<1x16x288xbf16> to vector<16x288xbf16>
      %c16 = arith.constant 16 : index
      %c0_16 = arith.constant 0 : index
      %16 = vector.load %arg6[%c16, %c0_16] : memref<144x288xbf16, #tpu.memory_space<vmem>>, vector<16x288xbf16>
      tpu.vector_store %arg6[%c16, %c0_16], %15 {strides = array<i32>} : memref<144x288xbf16, #tpu.memory_space<vmem>>, vector<16x288xbf16>,
      %c0_17 = arith.constant 0 : index
      %c0_18 = arith.constant 0 : index
      %c2 = arith.constant 2 : index
      %17 = vector.load %arg2[%c0_17, %c0_18, %c2] : memref<1x16x342xbf16, #tpu.memory_space<vmem>>, vector<1x16x288xbf16>
      %18 = vector.shape_cast %17 : vector<1x16x288xbf16> to vector<16x288xbf16>
      %c32 = arith.constant 32 : index
      %c0_19 = arith.constant 0 : index
      %19 = vector.load %arg6[%c32, %c0_19] : memref<144x288xbf16, #tpu.memory_space<vmem>>, vector<16x288xbf16>
      tpu.vector_store %arg6[%c32, %c0_19], %18 {strides = array<i32>} : memref<144x288xbf16, #tpu.memory_space<vmem>>, vector<16x288xbf16>,
      %c0_20 = arith.constant 0 : index
      %c0_21 = arith.constant 0 : index
      %c18 = arith.constant 18 : index
      %20 = vector.load %arg2[%c0_20, %c0_21, %c18] : memref<1x16x342xbf16, #tpu.memory_space<vmem>>, vector<1x16x288xbf16>
      %21 = vector.shape_cast %20 : vector<1x16x288xbf16> to vector<16x288xbf16>
      %c48 = arith.constant 48 : index
      %c0_22 = arith.constant 0 : index
      %22 = vector.load %arg6[%c48, %c0_22] : memref<144x288xbf16, #tpu.memory_space<vmem>>, vector<16x288xbf16>
      tpu.vector_store %arg6[%c48, %c0_22], %21 {strides = array<i32>} : memref<144x288xbf16, #tpu.memory_space<vmem>>, vector<16x288xbf16>,
      %c0_23 = arith.constant 0 : index
      %c0_24 = arith.constant 0 : index
      %c19 = arith.constant 19 : index
      %23 = vector.load %arg2[%c0_23, %c0_24, %c19] : memref<1x16x342xbf16, #tpu.memory_space<vmem>>, vector<1x16x288xbf16>
      %24 = vector.shape_cast %23 : vector<1x16x288xbf16> to vector<16x288xbf16>
      %c64 = arith.constant 64 : index
      %c0_25 = arith.constant 0 : index
      %25 = vector.load %arg6[%c64, %c0_25] : memref<144x288xbf16, #tpu.memory_space<vmem>>, vector<16x288xbf16>
      tpu.vector_store %arg6[%c64, %c0_25], %24 {strides = array<i32>} : memref<144x288xbf16, #tpu.memory_space<vmem>>, vector<16x288xbf16>,
      %c0_26 = arith.constant 0 : index
      %c0_27 = arith.constant 0 : index
      %c20 = arith.constant 20 : index
      %26 = vector.load %arg2[%c0_26, %c0_27, %c20] : memref<1x16x342xbf16, #tpu.memory_space<vmem>>, vector<1x16x288xbf16>
      %27 = vector.shape_cast %26 : vector<1x16x288xbf16> to vector<16x288xbf16>
      %c80 = arith.constant 80 : index
      %c0_28 = arith.constant 0 : index
      %28 = vector.load %arg6[%c80, %c0_28] : memref<144x288xbf16, #tpu.memory_space<vmem>>, vector<16x288xbf16>
      tpu.vector_store %arg6[%c80, %c0_28], %27 {strides = array<i32>} : memref<144x288xbf16, #tpu.memory_space<vmem>>, vector<16x288xbf16>,
      %c0_29 = arith.constant 0 : index
      %c0_30 = arith.constant 0 : index
      %c36 = arith.constant 36 : index
      %29 = vector.load %arg2[%c0_29, %c0_30, %c36] : memref<1x16x342xbf16, #tpu.memory_space<vmem>>, vector<1x16x288xbf16>
      %30 = vector.shape_cast %29 : vector<1x16x288xbf16> to vector<16x288xbf16>
      %c96 = arith.constant 96 : index
      %c0_31 = arith.constant 0 : index
      %31 = vector.load %arg6[%c96, %c0_31] : memref<144x288xbf16, #tpu.memory_space<vmem>>, vector<16x288xbf16>
      tpu.vector_store %arg6[%c96, %c0_31], %30 {strides = array<i32>} : memref<144x288xbf16, #tpu.memory_space<vmem>>, vector<16x288xbf16>,
      %c0_32 = arith.constant 0 : index
      %c0_33 = arith.constant 0 : index
      %c37 = arith.constant 37 : index
      %32 = vector.load %arg2[%c0_32, %c0_33, %c37] : memref<1x16x342xbf16, #tpu.memory_space<vmem>>, vector<1x16x288xbf16>
      %33 = vector.shape_cast %32 : vector<1x16x288xbf16> to vector<16x288xbf16>
      %c112 = arith.constant 112 : index
      %c0_34 = arith.constant 0 : index
      %34 = vector.load %arg6[%c112, %c0_34] : memref<144x288xbf16, #tpu.memory_space<vmem>>, vector<16x288xbf16>
      tpu.vector_store %arg6[%c112, %c0_34], %33 {strides = array<i32>} : memref<144x288xbf16, #tpu.memory_space<vmem>>, vector<16x288xbf16>,
      %c0_35 = arith.constant 0 : index
      %c0_36 = arith.constant 0 : index
      %c38 = arith.constant 38 : index
      %35 = vector.load %arg2[%c0_35, %c0_36, %c38] : memref<1x16x342xbf16, #tpu.memory_space<vmem>>, vector<1x16x288xbf16>
      %36 = vector.shape_cast %35 : vector<1x16x288xbf16> to vector<16x288xbf16>
      %c128 = arith.constant 128 : index
      %c0_37 = arith.constant 0 : index
      %37 = vector.load %arg6[%c128, %c0_37] : memref<144x288xbf16, #tpu.memory_space<vmem>>, vector<16x288xbf16>
      tpu.vector_store %arg6[%c128, %c0_37], %36 {strides = array<i32>} : memref<144x288xbf16, #tpu.memory_space<vmem>>, vector<16x288xbf16>,
    } else {
    }
    %c0 = arith.constant 0 : index
    %c0_1 = arith.constant 0 : index
    %3 = vector.load %arg3[%c0, %c0_1] : memref<8x144xbf16, #tpu.memory_space<vmem>>, vector<8x144xbf16>
    %c0_2 = arith.constant 0 : index
    %c0_3 = arith.constant 0 : index
    %4 = vector.load %arg6[%c0_2, %c0_3] : memref<144x288xbf16, #tpu.memory_space<vmem>>, vector<144x288xbf16>
    %cst = arith.constant dense<0.000000e+00> : vector<8x288xf32>
    %5 = tpu.matmul %3, %4, %cst {dimension_numbers = #tpu.dot_dimension_numbers<[1], [0], [0], [1], [0, 0, 1, 1], [], []>} : vector<8x144xbf16>, vector<144x288xbf16>, vector<8x288xf32> -> vector<8x288xf32>
    %c0_4 = arith.constant 0 : index
    %c0_5 = arith.constant 0 : index
    %6 = vector.load %arg4[%c0_4, %c0_5] : memref<8x1xf32, #tpu.memory_space<vmem>>, vector<8x1xf32>
    %7 = vector.broadcast %6 : vector<8x1xf32> to vector<8x288xf32>
    %8 = arith.addf %5, %7 : vector<8x288xf32>
    %9 = vector.shape_cast %8 : vector<8x288xf32> to vector<1x8x288xf32>
    %c0_6 = arith.constant 0 : index
    %c0_7 = arith.constant 0 : index
    %c0_8 = arith.constant 0 : index
    %10 = vector.load %arg5[%c0_6, %c0_7, %c0_8] : memref<1x8x288xf32, #tpu.memory_space<vmem>>, vector<1x8x288xf32>
    tpu.vector_store %arg5[%c0_6, %c0_7, %c0_8], %9 {strides = array<i32>} : memref<1x8x288xf32, #tpu.memory_space<vmem>>, vector<1x8x288xf32>,
    return
  }
  func.func @transform_0(%arg0: i32, %arg1: i32) -> (i32, i32, i32) {
    %c0_i32 = arith.constant 0 : i32
    %c0_i32_0 = arith.constant 0 : i32
    %c0_i32_1 = arith.constant 0 : i32
    return %arg0, %c0_i32, %c0_i32_0 : i32, i32, i32
  }
  func.func @transform_1(%arg0: i32, %arg1: i32) -> (i32, i32) {
    %c0_i32 = arith.constant 0 : i32
    %c0_i32_0 = arith.constant 0 : i32
    return %arg1, %c0_i32 : i32, i32
  }
  func.func @transform_2(%arg0: i32, %arg1: i32) -> (i32, i32) {
    %c0_i32 = arith.constant 0 : i32
    %c0_i32_0 = arith.constant 0 : i32
    return %arg1, %c0_i32 : i32, i32
  }
  func.func @transform_3(%arg0: i32, %arg1: i32) -> (i32, i32, i32) {
    %c0_i32 = arith.constant 0 : i32
    %c0_i32_0 = arith.constant 0 : i32
    return %arg0, %arg1, %c0_i32 : i32, i32, i32
  }
}

</mosaic_0001>

<llo_original>
// kernel: tpu_custom_call.1
$region0: #{tpu_custom_call.1}
  #allocation0 [shape = 'u32[]', space=smem, size = 0x4, offset = 0x4, fixed_abs, tag = 'smem constant byte address 0x4 - core index']
  #allocation1 [shape = 'u32[144,128]{1,0:T(1,128)}', space=vmem, size = 0x12000, scoped, tag = 'internal scratch']
  #allocation2 [shape = 'bf16[144,288]{1,0:T(8,128)(2,1)}', space=vmem, size = 0x1b000, scoped, tag = 'scratch operand']
  %s0 = inlined_call_operand.hbm [shape: bf16[2,16,342], index: 0, kind: input, shape index: {}]
  %s1 = inlined_call_operand.vmem [shape: bf16[8,144], index: 1, kind: input, shape index: {}]
  %s2 = inlined_call_operand.vmem [shape: f32[8,1], index: 2, kind: input, shape index: {}]
  %s3 = inlined_call_operand.hbm [shape: f32[2,8,288], index: 3, kind: output, shape index: {}]
  %s4 = sld [smem:[#allocation0]]
  $region53: #{tpu_custom_call.1} parent=0
    _
  %s6 = ssub.s32 1, %s4
  %s7 = scalar_select 0, %s6, %s4
  $region1: #{tpu_custom_call.1} parent=0
    #allocation3 [shape = 'u8[24576]{0}', space=vmem, size = 0x6000, scoped, tag = 'input window, operand 0']
    #allocation4 [shape = 's32[2]{0}', space=sflag, size = 0x8, scoped, tag = 'scoped memory for tpu_custom_call.1']
    #allocation5 [shape = 's32[2]{0}', space=sflag, size = 0x8, scoped, tag = 'scoped memory for tpu_custom_call.1']
    #allocation6 [shape = 'u8[24576]{0}', space=vmem, size = 0x6000, scoped, tag = 'output window, operand 0']
    %8 = vsyncpa [#allocation4], 0
    %s9 = scalar_lea.sflag [#allocation4], 1
    %10 = vsyncpa %s9, 0
    %11 = vsyncpa [#allocation5], 0
    %s12 = scalar_lea.sflag [#allocation5], 1
    %13 = vsyncpa %s12, 0
    loop: start=0, step=1, limit=4
    $region2: #{tpu_custom_call.1} parent=1 // loop_pre_header
      _
    $region3: #{tpu_custom_call.1} parent=1 // loop_header
      %s15 = sphi 0, %s19
      %p16 = scmp.ge.s32.totalorder %s15, 4
      %s22 = sphi 0, %s34
      %s23 = sphi 0, %s30
      %s24 = sphi 0, %s22
      %s25 = sphi 0, %s23
      %s26 = sphi 0, %s24
      %s27 = sphi 0, %s25
      %s37 = sphi 0, %s39
      %s40 = sphi 0, %s37
      %s41 = sphi 0, %s40
      %s57 = sphi 0, %s41
      %s63 = sphi 0, %s65
      %s66 = sphi 0, %s63
      %s67 = sphi 0, %s66
      %s83 = sphi 0, %s67
      %s89 = sphi 0, %s91
      %s92 = sphi 0, %s89
      %s93 = sphi 0, %s92
      %s109 = sphi 0, %s93
      %s117 = sphi 0, %s119
      %s120 = sphi 0, %s117
      %s121 = sphi 0, %s120
      %s137 = sphi 0, %s121
    $region4: #{tpu_custom_call.1} parent=1 // loop_header_branch
      %18 = sbr.rel (%p16) target = $region8
    $region5: #{tpu_custom_call.1} parent=1 // loop_body
      %s20 = ssub.s32 %s15, 1
      %s21 = ssub.s32 %s15, 2
      %s28 = sadd.s32 1, %s23
      %p29 = scmp.ge.s32.totalorder %s28, 1
      %s30 = scalar_select %p29, 0, %s28
      %s31 = sadd.s32 1, %s22
      %s32 = scalar_select %p29, %s31, %s22
      %p33 = scmp.ge.s32.totalorder %s32, 2
      %s34 = scalar_select %p33, 0, %s32
      %s35 = ssub.s32 %s22, %s34
      %p36 = scmp.eq.s32.totalorder %s35, 0
      %s38 = sadd.s32 %s37, 1
      %s39 = scalar_select %p36, %s37, %s38
      %p42 = pneg %p36
      %p43 = scmp.eq.s32.totalorder %s15, 1
      %p44 = por %p42, %p43
      %p45 = scmp.ne.s32.totalorder %s37, %s40
      %p46 = scmp.eq.s32.totalorder %s15, 0
      %p47 = por %p45, %p46
      %p48 = scmp.ne.s32.totalorder %s37, %s40
      %p49 = scmp.eq.s32.totalorder %s20, 1
      %p50 = por %p48, %p49
      %p51 = scmp.ne.s32.totalorder %s40, %s41
      %p52 = scmp.eq.s32.totalorder %s20, 0
      %p53 = por %p51, %p52
      %p54 = scmp.ne.s32.totalorder %s40, %s41
      %p55 = scmp.eq.s32.totalorder %s21, 1
      %p56 = por %p54, %p55
      %p58 = scmp.ne.s32.totalorder %s41, %s57
      %p59 = scmp.eq.s32.totalorder %s21, 0
      %p60 = por %p58, %p59
      %s61 = ssub.s32 %s23, %s30
      %p62 = scmp.eq.s32.totalorder %s61, 0
      %s64 = sadd.s32 %s63, 1
      %s65 = scalar_select %p62, %s63, %s64
      %p68 = pneg %p62
      %p69 = scmp.eq.s32.totalorder %s15, 1
      %p70 = por %p68, %p69
      %p71 = scmp.ne.s32.totalorder %s63, %s66
      %p72 = scmp.eq.s32.totalorder %s15, 0
      %p73 = por %p71, %p72
      %p74 = scmp.ne.s32.totalorder %s63, %s66
      %p75 = scmp.eq.s32.totalorder %s20, 1
      %p76 = por %p74, %p75
      %p77 = scmp.ne.s32.totalorder %s66, %s67
      %p78 = scmp.eq.s32.totalorder %s20, 0
      %p79 = por %p77, %p78
      %p80 = scmp.ne.s32.totalorder %s66, %s67
      %p81 = scmp.eq.s32.totalorder %s21, 1
      %p82 = por %p80, %p81
      %p84 = scmp.ne.s32.totalorder %s67, %s83
      %p85 = scmp.eq.s32.totalorder %s21, 0
      %p86 = por %p84, %p85
      %s87 = ssub.s32 %s23, %s30
      %p88 = scmp.eq.s32.totalorder %s87, 0
      %s90 = sadd.s32 %s89, 1
      %s91 = scalar_select %p88, %s89, %s90
      %p94 = pneg %p88
      %p95 = scmp.eq.s32.totalorder %s15, 1
      %p96 = por %p94, %p95
      %p97 = scmp.ne.s32.totalorder %s89, %s92
      %p98 = scmp.eq.s32.totalorder %s15, 0
      %p99 = por %p97, %p98
      %p100 = scmp.ne.s32.totalorder %s89, %s92
      %p101 = scmp.eq.s32.totalorder %s20, 1
      %p102 = por %p100, %p101
      %p103 = scmp.ne.s32.totalorder %s92, %s93
      %p104 = scmp.eq.s32.totalorder %s20, 0
      %p105 = por %p103, %p104
      %p106 = scmp.ne.s32.totalorder %s92, %s93
      %p107 = scmp.eq.s32.totalorder %s21, 1
      %p108 = por %p106, %p107
      %p110 = scmp.ne.s32.totalorder %s93, %s109
      %p111 = scmp.eq.s32.totalorder %s21, 0
      %p112 = por %p110, %p111
      %s113 = ssub.s32 %s22, %s34
      %s114 = ssub.s32 %s23, %s30
      %s115 = sor.u32 %s113, %s114
      %p116 = scmp.eq.s32.totalorder %s115, 0
      %s118 = sadd.s32 %s117, 1
      %s119 = scalar_select %p116, %s117, %s118
      %p122 = pneg %p116
      %p123 = scmp.eq.s32.totalorder %s15, 1
      %p124 = por %p122, %p123
      %p125 = scmp.ne.s32.totalorder %s117, %s120
      %p126 = scmp.eq.s32.totalorder %s15, 0
      %p127 = por %p125, %p126
      %p128 = scmp.ne.s32.totalorder %s117, %s120
      %p129 = scmp.eq.s32.totalorder %s20, 1
      %p130 = por %p128, %p129
      %p131 = scmp.ne.s32.totalorder %s120, %s121
      %p132 = scmp.eq.s32.totalorder %s20, 0
      %p133 = por %p131, %p132
      %p134 = scmp.ne.s32.totalorder %s120, %s121
      %p135 = scmp.eq.s32.totalorder %s21, 1
      %p136 = por %p134, %p135
      %p138 = scmp.ne.s32.totalorder %s121, %s137
      %p139 = scmp.eq.s32.totalorder %s21, 0
      %p140 = por %p138, %p139
      %p141 = scmp.le.s32.totalorder 1, %s15
      %p142 = scmp.lt.s32.totalorder %s15, 3
      %p143 = pnand %p141, %p142
      %p144 = pneg %p143
      // Predicated region
      $region9: #{tpu_custom_call.1} parent=5 // pred_check
        _
      $region10: #{tpu_custom_call.1} parent=5 // pred_check_branch
        %146 = sbr.rel (%p143) target = $region12
      $region11: #{tpu_custom_call.1} parent=5 // pred_region
        %s147 = ssub.s32 %s15, 1
        // Predicated region
        $region13: #{tpu_custom_call.1} parent=11 // pred_check
          %p148 = pneg %p79
        $region14: #{tpu_custom_call.1} parent=11 // pred_check_branch
          %150 = sbr.rel (%p148) target = $region16
        $region15: #{tpu_custom_call.1} parent=11 // pred_region
          %p151 = scmp.lt.s32.totalorder %s25, 0
          %s152 = scalar_select %p151, %s25, 0
          %s153 = smul.addr %s152, 2
          %s154 = smul.addr %s153, 4
          %s155 = scalar_lea.vmem %s1, %s154
        $region16: #{tpu_custom_call.1} parent=11 // pred_fallthru
          _
        // Predicated region
        $region17: #{tpu_custom_call.1} parent=11 // pred_check
          %p156 = pneg %p105
        $region18: #{tpu_custom_call.1} parent=11 // pred_check_branch
          %158 = sbr.rel (%p156) target = $region20
        $region19: #{tpu_custom_call.1} parent=11 // pred_region
          %p159 = scmp.lt.s32.totalorder %s25, 0
          %s160 = scalar_select %p159, %s25, 0
          %s161 = smul.addr %s160, 8
          %s162 = scalar_lea.vmem %s2, %s161
        $region20: #{tpu_custom_call.1} parent=11 // pred_fallthru
          _
      $region12: #{tpu_custom_call.1} parent=5 // pred_fallthru
        _
      %p163 = scmp.lt.s32.totalorder %s15, 2
      // Predicated region
      $region21: #{tpu_custom_call.1} parent=5 // pred_check
        %p164 = pneg %p163
      $region22: #{tpu_custom_call.1} parent=5 // pred_check_branch
        %166 = sbr.rel (%p164) target = $region24
      $region23: #{tpu_custom_call.1} parent=5 // pred_region
        // Predicated region
        $region25: #{tpu_custom_call.1} parent=23 // pred_check
          %p167 = pneg %p47
        $region26: #{tpu_custom_call.1} parent=23 // pred_check_branch
          %169 = sbr.rel (%p167) target = $region28
        $region27: #{tpu_custom_call.1} parent=23 // pred_region
          %s170 = sand.u32 %s37, 1
          %s171 = scalar_lea.sflag [#allocation4], %s170
          %s172 = sand.u32 %s37, 1
          %s173 = smul.addr %s172, 24
          %s174 = scalar_lea.vmem [#allocation3], %s173
          %s176 = ssub.s32 384, 384
          %177 = vsyncadd %s171, %s176
          %s178 = smul.addr %s22, 6
          %s179 = smul.addr %s178, 64
          %s180 = scalar_lea.hbm %s0, %s179
          %s181 = sshll.u32 %s174, 4
          %s182 = int_to_ptr.vmem [resolvable:$true] %s181
          %187 = dma.hbm_to_vmem [thread:$0]  %s180, 384, %s182, %s171, 192, 192, 12
        $region28: #{tpu_custom_call.1} parent=23 // pred_fallthru
          _
      $region24: #{tpu_custom_call.1} parent=5 // pred_fallthru
        _
      %p188 = scmp.le.s32.totalorder 1, %s15
      %p189 = scmp.lt.s32.totalorder %s15, 3
      %p190 = pnand %p188, %p189
      %p191 = pneg %p190
      // Predicated region
      $region29: #{tpu_custom_call.1} parent=5 // pred_check
        _
      $region30: #{tpu_custom_call.1} parent=5 // pred_check_branch
        %193 = sbr.rel (%p190) target = $region32
      $region31: #{tpu_custom_call.1} parent=5 // pred_region
        %s194 = ssub.s32 %s15, 1
        %s195 = sand.u32 %s40, 1
        %s196 = scalar_lea.sflag [#allocation4], %s195
        %s197 = sand.u32 %s40, 1
        %s198 = smul.addr %s197, 24
        %s199 = scalar_lea.vmem [#allocation3], %s198
        // Predicated region
        $region33: #{tpu_custom_call.1} parent=31 // pred_check
          %p200 = pneg %p53
        $region34: #{tpu_custom_call.1} parent=31 // pred_check_branch
          %202 = sbr.rel (%p200) target = $region36
        $region35: #{tpu_custom_call.1} parent=31 // pred_region
          %203 = dma.done %s196, 384
        $region36: #{tpu_custom_call.1} parent=31 // pred_fallthru
          _
        %s204 = sand.u32 %s40, 1
        %s205 = scalar_lea.sflag [#allocation4], %s204
        %s206 = sand.u32 %s40, 1
        %s207 = smul.addr %s206, 24
        %s208 = scalar_lea.vmem [#allocation3], %s207
        %p209 = pneg %p53
        %p210 = pneg %p50
        %p211 = scmp.lt.s32.totalorder %s25, 0
        %s212 = scalar_select %p211, %s25, 0
        %s213 = smul.addr %s212, 2
        %s214 = smul.addr %s213, 4
        %s215 = scalar_lea.vmem %s1, %s214
        %p216 = pneg %p79
        %p217 = pneg %p76
        %p218 = scmp.lt.s32.totalorder %s25, 0
        %s219 = scalar_select %p218, %s25, 0
        %s220 = smul.addr %s219, 8
        %s221 = scalar_lea.vmem %s2, %s220
        %p222 = pneg %p105
        %p223 = pneg %p102
        %p224 = pneg %p133
        %p225 = pneg %p130
        %s226 = sand.u32 %s120, 1
        %s227 = scalar_lea.sflag [#allocation5], %s226
        %s228 = sand.u32 %s120, 1
        %s229 = smul.addr %s228, 24
        %s230 = scalar_lea.vmem [#allocation6], %s229
        %p231 = scmp.lt.s32.totalorder %s25, 0
        %s232 = scalar_select %p231, %s25, 0
        %s233 = smul.addr %s232, 2
        %s234 = smul.addr %s233, 4
        %s235 = scalar_lea.vmem %s1, %s234
        %p236 = scmp.lt.s32.totalorder %s25, 0
        %s237 = scalar_select %p236, %s25, 0
        %s238 = smul.addr %s237, 8
        %s239 = scalar_lea.vmem %s2, %s238
        %p241 = scmp.eq.s32.totalorder %s25, 0
        // Predicated region
        $region37: #{tpu_custom_call.1} parent=31 // pred_check
          %p242 = pneg %p241
        $region38: #{tpu_custom_call.1} parent=31 // pred_check_branch
          %244 = sbr.rel (%p242) target = $region40
        $region39: #{tpu_custom_call.1} parent=31 // pred_region
          %v245 = vld [vmem:[%s199] sm:$0xff]
          %v246 = vld [vmem:[%s199 + $0x8] sm:$0xf]
          %v247 = vld [vmem:[%s199 + $0xc] sm:$0xff]
          %v248 = vld [vmem:[%s199 + $0x14] sm:$0xf]
          %249 = vst [vmem:[#allocation2] sm:$0xff] %v245
          %vm250 = vcmask 257024
          %251 = vst.msk [vmem:[#allocation2 + $0x8] sm:$0xf] %vm250, %v246
          %252 = vst [vmem:[#allocation2 + $0xc] sm:$0xff] %v247
          %253 = vst.msk [vmem:[#allocation2 + $0x14] sm:$0xf] %vm250, %v248
          %v254 = vld [vmem:[%s199] sm:$0xff]
          %v255 = vld [vmem:[%s199 + $0x8] sm:$0xf]
          %v256 = vld [vmem:[%s199 + $0xc] sm:$0xff]
          %v257 = vld [vmem:[%s199 + $0x14] sm:$0xf]
          %262 = vrot.lane.b32.xlu0 %v254, 127
          %v263 = vpop.permute.xlu0 %262
          %264 = vrot.lane.b32.xlu0 %v255, 127
          %v265 = vpop.permute.xlu0 %264
          %266 = vrot.lane.b32.xlu0 %v256, 127
          %v267 = vpop.permute.xlu0 %266
          %268 = vrot.lane.b32.xlu0 %v257, 127
          %v269 = vpop.permute.xlu0 %268
          %v270 = vrot.slane %v263, 4
          %v271 = vrot.slane %v265, 4
          %v272 = vrot.slane %v267, 4
          %v273 = vrot.slane %v269, 4
          %vm274 = vcmask 1043456
          %v275 = vsel %vm274, %v270, %v271
          %vm276 = vcmask 1039360
          %v277 = vsel %vm276, %v263, %v275
          %v278 = vsel %vm274, %v272, %v273
          %v279 = vsel %vm276, %v267, %v278
          %284 = vst [vmem:[#allocation2 + $0x18] sm:$0xff] %v277
          %285 = vst.msk [vmem:[#allocation2 + $0x20] sm:$0xf] %vm250, %v265
          %286 = vst [vmem:[#allocation2 + $0x24] sm:$0xff] %v279
          %287 = vst.msk [vmem:[#allocation2 + $0x2c] sm:$0xf] %vm250, %v269
          %v288 = vld [vmem:[%s199] sm:$0xff]
          %v289 = vld [vmem:[%s199 + $0x8] sm:$0xf]
          %v290 = vld [vmem:[%s199 + $0xc] sm:$0xff]
          %v291 = vld [vmem:[%s199 + $0x14] sm:$0xf]
          %296 = vrot.lane.b32.xlu0 %v288, 126
          %v297 = vpop.permute.xlu0 %296
          %298 = vrot.lane.b32.xlu0 %v289, 126
          %v299 = vpop.permute.xlu0 %298
          %300 = vrot.lane.b32.xlu0 %v290, 126
          %v301 = vpop.permute.xlu0 %300
          %302 = vrot.lane.b32.xlu0 %v291, 126
          %v303 = vpop.permute.xlu0 %302
          %v304 = vrot.slane %v297, 4
          %v305 = vrot.slane %v299, 4
          %v306 = vrot.slane %v301, 4
          %v307 = vrot.slane %v303, 4
          %v308 = vsel %vm274, %v304, %v305
          %vm309 = vcmask 1031168
          %v310 = vsel %vm309, %v297, %v308
          %v311 = vsel %vm274, %v306, %v307
          %v312 = vsel %vm309, %v301, %v311
          %317 = vst [vmem:[#allocation2 + $0x30] sm:$0xff] %v310
          %318 = vst.msk [vmem:[#allocation2 + $0x38] sm:$0xf] %vm250, %v299
          %319 = vst [vmem:[#allocation2 + $0x3c] sm:$0xff] %v312
          %320 = vst.msk [vmem:[#allocation2 + $0x44] sm:$0xf] %vm250, %v303
          %v321 = vld [vmem:[%s199] sm:$0xff]
          %v322 = vld [vmem:[%s199 + $0x8] sm:$0xf]
          %v323 = vld [vmem:[%s199 + $0xc] sm:$0xff]
          %v324 = vld [vmem:[%s199 + $0x14] sm:$0xf]
          %329 = vrot.lane.b32.xlu0 %v321, 110
          %v330 = vpop.permute.xlu0 %329
          %331 = vrot.lane.b32.xlu0 %v322, 110
          %v332 = vpop.permute.xlu0 %331
          %333 = vrot.lane.b32.xlu0 %v323, 110
          %v334 = vpop.permute.xlu0 %333
          %335 = vrot.lane.b32.xlu0 %v324, 110
          %v336 = vpop.permute.xlu0 %335
          %v337 = vrot.slane %v330, 4
          %v338 = vrot.slane %v332, 4
          %v339 = vrot.slane %v334, 4
          %v340 = vrot.slane %v336, 4
          %v341 = vsel %vm274, %v337, %v338
          %vm342 = vcmask 900096
          %v343 = vsel %vm342, %v330, %v341
          %v344 = vsel %vm274, %v339, %v340
          %v345 = vsel %vm342, %v334, %v344
          %350 = vst [vmem:[#allocation2 + $0x48] sm:$0xff] %v343
          %351 = vst.msk [vmem:[#allocation2 + $0x50] sm:$0xf] %vm250, %v332
          %352 = vst [vmem:[#allocation2 + $0x54] sm:$0xff] %v345
          %353 = vst.msk [vmem:[#allocation2 + $0x5c] sm:$0xf] %vm250, %v336
          %v354 = vld [vmem:[%s199] sm:$0xff]
          %v355 = vld [vmem:[%s199 + $0x8] sm:$0xf]
          %v356 = vld [vmem:[%s199 + $0xc] sm:$0xff]
          %v357 = vld [vmem:[%s199 + $0x14] sm:$0xf]
          %362 = vrot.lane.b32.xlu0 %v354, 109
          %v363 = vpop.permute.xlu0 %362
          %364 = vrot.lane.b32.xlu0 %v355, 109
          %v365 = vpop.permute.xlu0 %364
          %366 = vrot.lane.b32.xlu0 %v356, 109
          %v367 = vpop.permute.xlu0 %366
          %368 = vrot.lane.b32.xlu0 %v357, 109
          %v369 = vpop.permute.xlu0 %368
          %v370 = vrot.slane %v363, 4
          %v371 = vrot.slane %v365, 4
          %v372 = vrot.slane %v367, 4
          %v373 = vrot.slane %v369, 4
          %v374 = vsel %vm274, %v370, %v371
          %vm375 = vcmask 891904
          %v376 = vsel %vm375, %v363, %v374
          %v377 = vsel %vm274, %v372, %v373
          %v378 = vsel %vm375, %v367, %v377
          %383 = vst [vmem:[#allocation2 + $0x60] sm:$0xff] %v376
          %384 = vst.msk [vmem:[#allocation2 + $0x68] sm:$0xf] %vm250, %v365
          %385 = vst [vmem:[#allocation2 + $0x6c] sm:$0xff] %v378
          %386 = vst.msk [vmem:[#allocation2 + $0x74] sm:$0xf] %vm250, %v369
          %v387 = vld [vmem:[%s199] sm:$0xff]
          %v388 = vld [vmem:[%s199 + $0x8] sm:$0xf]
          %v389 = vld [vmem:[%s199 + $0xc] sm:$0xff]
          %v390 = vld [vmem:[%s199 + $0x14] sm:$0xf]
          %395 = vrot.lane.b32.xlu0 %v387, 108
          %v396 = vpop.permute.xlu0 %395
          %397 = vrot.lane.b32.xlu0 %v388, 108
          %v398 = vpop.permute.xlu0 %397
          %399 = vrot.lane.b32.xlu0 %v389, 108
          %v400 = vpop.permute.xlu0 %399
          %401 = vrot.lane.b32.xlu0 %v390, 108
          %v402 = vpop.permute.xlu0 %401
          %v403 = vrot.slane %v396, 4
          %v404 = vrot.slane %v398, 4
          %v405 = vrot.slane %v400, 4
          %v406 = vrot.slane %v402, 4
          %v407 = vsel %vm274, %v403, %v404
          %vm408 = vcmask 883712
          %v409 = vsel %vm408, %v396, %v407
          %v410 = vsel %vm274, %v405, %v406
          %v411 = vsel %vm408, %v400, %v410
          %416 = vst [vmem:[#allocation2 + $0x78] sm:$0xff] %v409
          %417 = vst.msk [vmem:[#allocation2 + $0x80] sm:$0xf] %vm250, %v398
          %418 = vst [vmem:[#allocation2 + $0x84] sm:$0xff] %v411
          %419 = vst.msk [vmem:[#allocation2 + $0x8c] sm:$0xf] %vm250, %v402
          %v420 = vld [vmem:[%s199] sm:$0xff]
          %v421 = vld [vmem:[%s199 + $0x8] sm:$0xf]
          %v422 = vld [vmem:[%s199 + $0xc] sm:$0xff]
          %v423 = vld [vmem:[%s199 + $0x14] sm:$0xf]
          %428 = vrot.lane.b32.xlu0 %v420, 92
          %v429 = vpop.permute.xlu0 %428
          %430 = vrot.lane.b32.xlu0 %v421, 92
          %v431 = vpop.permute.xlu0 %430
          %432 = vrot.lane.b32.xlu0 %v422, 92
          %v433 = vpop.permute.xlu0 %432
          %434 = vrot.lane.b32.xlu0 %v423, 92
          %v435 = vpop.permute.xlu0 %434
          %v436 = vrot.slane %v429, 4
          %v437 = vrot.slane %v431, 4
          %v438 = vrot.slane %v433, 4
          %v439 = vrot.slane %v435, 4
          %v440 = vsel %vm274, %v436, %v437
          %vm441 = vcmask 752640
          %v442 = vsel %vm441, %v429, %v440
          %v443 = vsel %vm274, %v438, %v439
          %v444 = vsel %vm441, %v433, %v443
          %449 = vst [vmem:[#allocation2 + $0x90] sm:$0xff] %v442
          %450 = vst.msk [vmem:[#allocation2 + $0x98] sm:$0xf] %vm250, %v431
          %451 = vst [vmem:[#allocation2 + $0x9c] sm:$0xff] %v444
          %452 = vst.msk [vmem:[#allocation2 + $0xa4] sm:$0xf] %vm250, %v435
          %v453 = vld [vmem:[%s199] sm:$0xff]
          %v454 = vld [vmem:[%s199 + $0x8] sm:$0xf]
          %v455 = vld [vmem:[%s199 + $0xc] sm:$0xff]
          %v456 = vld [vmem:[%s199 + $0x14] sm:$0xf]
          %461 = vrot.lane.b32.xlu0 %v453, 91
          %v462 = vpop.permute.xlu0 %461
          %463 = vrot.lane.b32.xlu0 %v454, 91
          %v464 = vpop.permute.xlu0 %463
          %465 = vrot.lane.b32.xlu0 %v455, 91
          %v466 = vpop.permute.xlu0 %465
          %467 = vrot.lane.b32.xlu0 %v456, 91
          %v468 = vpop.permute.xlu0 %467
          %v469 = vrot.slane %v462, 4
          %v470 = vrot.slane %v464, 4
          %v471 = vrot.slane %v466, 4
          %v472 = vrot.slane %v468, 4
          %v473 = vsel %vm274, %v469, %v470
          %vm474 = vcmask 744448
          %v475 = vsel %vm474, %v462, %v473
          %v476 = vsel %vm274, %v471, %v472
          %v477 = vsel %vm474, %v466, %v476
          %482 = vst [vmem:[#allocation2 + $0xa8] sm:$0xff] %v475
          %483 = vst.msk [vmem:[#allocation2 + $0xb0] sm:$0xf] %vm250, %v464
          %484 = vst [vmem:[#allocation2 + $0xb4] sm:$0xff] %v477
          %485 = vst.msk [vmem:[#allocation2 + $0xbc] sm:$0xf] %vm250, %v468
          %v486 = vld [vmem:[%s199] sm:$0xff]
          %v487 = vld [vmem:[%s199 + $0x8] sm:$0xf]
          %v488 = vld [vmem:[%s199 + $0xc] sm:$0xff]
          %v489 = vld [vmem:[%s199 + $0x14] sm:$0xf]
          %494 = vrot.lane.b32.xlu0 %v486, 90
          %v495 = vpop.permute.xlu0 %494
          %496 = vrot.lane.b32.xlu0 %v487, 90
          %v497 = vpop.permute.xlu0 %496
          %498 = vrot.lane.b32.xlu0 %v488, 90
          %v499 = vpop.permute.xlu0 %498
          %500 = vrot.lane.b32.xlu0 %v489, 90
          %v501 = vpop.permute.xlu0 %500
          %v502 = vrot.slane %v495, 4
          %v503 = vrot.slane %v497, 4
          %v504 = vrot.slane %v499, 4
          %v505 = vrot.slane %v501, 4
          %v506 = vsel %vm274, %v502, %v503
          %vm507 = vcmask 736256
          %v508 = vsel %vm507, %v495, %v506
          %v509 = vsel %vm274, %v504, %v505
          %v510 = vsel %vm507, %v499, %v509
          %515 = vst [vmem:[#allocation2 + $0xc0] sm:$0xff] %v508
          %516 = vst.msk [vmem:[#allocation2 + $0xc8] sm:$0xf] %vm250, %v497
          %517 = vst [vmem:[#allocation2 + $0xcc] sm:$0xff] %v510
          %518 = vst.msk [vmem:[#allocation2 + $0xd4] sm:$0xf] %vm250, %v501
        $region40: #{tpu_custom_call.1} parent=31 // pred_fallthru
          _
        %v519 = vld [vmem:[%s235] sm:$0xff]
        %v520 = vld [vmem:[#allocation2] sm:$0xff]
        %v521 = vld [vmem:[#allocation2 + $0x8] sm:$0xf]
        %v522 = vld [vmem:[#allocation2 + $0xc] sm:$0xff]
        %v523 = vld [vmem:[#allocation2 + $0x14] sm:$0xf]
        %v524 = vld [vmem:[#allocation2 + $0x18] sm:$0xff]
        %v525 = vld [vmem:[#allocation2 + $0x20] sm:$0xf]
        %v526 = vld [vmem:[#allocation2 + $0x24] sm:$0xff]
        %v527 = vld [vmem:[#allocation2 + $0x2c] sm:$0xf]
        %v528 = vld [vmem:[#allocation2 + $0x30] sm:$0xff]
        %v529 = vld [vmem:[#allocation2 + $0x38] sm:$0xf]
        %v530 = vld [vmem:[#allocation2 + $0x3c] sm:$0xff]
        %v531 = vld [vmem:[#allocation2 + $0x44] sm:$0xf]
        %v532 = vld [vmem:[#allocation2 + $0x48] sm:$0xff]
        %v533 = vld [vmem:[#allocation2 + $0x50] sm:$0xf]
        %v534 = vld [vmem:[#allocation2 + $0x54] sm:$0xff]
        %v535 = vld [vmem:[#allocation2 + $0x5c] sm:$0xf]
        %v536 = vld [vmem:[#allocation2 + $0x60] sm:$0xff]
        %v537 = vld [vmem:[#allocation2 + $0x68] sm:$0xf]
        %v538 = vld [vmem:[#allocation2 + $0x6c] sm:$0xff]
        %v539 = vld [vmem:[#allocation2 + $0x74] sm:$0xf]
        %v540 = vld [vmem:[#allocation2 + $0x78] sm:$0xff]
        %v541 = vld [vmem:[#allocation2 + $0x80] sm:$0xf]
        %v542 = vld [vmem:[#allocation2 + $0x84] sm:$0xff]
        %v543 = vld [vmem:[#allocation2 + $0x8c] sm:$0xf]
        %v544 = vld [vmem:[#allocation2 + $0x90] sm:$0xff]
        %v545 = vld [vmem:[#allocation2 + $0x98] sm:$0xf]
        %v546 = vld [vmem:[#allocation2 + $0x9c] sm:$0xff]
        %v547 = vld [vmem:[#allocation2 + $0xa4] sm:$0xf]
        %v548 = vld [vmem:[#allocation2 + $0xa8] sm:$0xff]
        %v549 = vld [vmem:[#allocation2 + $0xb0] sm:$0xf]
        %v550 = vld [vmem:[#allocation2 + $0xb4] sm:$0xff]
        %v551 = vld [vmem:[#allocation2 + $0xbc] sm:$0xf]
        %v552 = vld [vmem:[#allocation2 + $0xc0] sm:$0xff]
        %v553 = vld [vmem:[#allocation2 + $0xc8] sm:$0xf]
        %v554 = vld [vmem:[#allocation2 + $0xcc] sm:$0xff]
        %v555 = vld [vmem:[#allocation2 + $0xd4] sm:$0xf]
        %v556 = vld [vmem:[%s239] sm:$0xff]
        %558 = vset.pattern.permute.xlu0 0
        %559 = vperm.xlu0 %558, %v556
        %v560 = vpop.permute.xlu0 %559
        %v563 = vunpack.c.l.b16 %v519
        %v564 = vunpack.c.h.b16 %v519
        %v565 = vpack.c.b16 %v563, %v563
        %v566 = vpack.c.b16 %v564, %v564
        %v604 = vunpack.c.l.b16 %v520
        %v605 = vunpack.c.h.b16 %v520
        %v606 = vunpack.c.l.b16 %v521
        %v607 = vunpack.c.l.b16 %v522
        %v608 = vunpack.c.h.b16 %v522
        %v609 = vunpack.c.l.b16 %v523
        %v610 = vunpack.c.l.b16 %v524
        %v611 = vunpack.c.h.b16 %v524
        %v612 = vunpack.c.l.b16 %v525
        %v613 = vunpack.c.l.b16 %v526
        %v614 = vunpack.c.h.b16 %v526
        %v615 = vunpack.c.l.b16 %v527
        %v616 = vunpack.c.l.b16 %v528
        %v617 = vunpack.c.h.b16 %v528
        %v618 = vunpack.c.l.b16 %v529
        %v619 = vunpack.c.l.b16 %v530
        %v620 = vunpack.c.h.b16 %v530
        %v621 = vunpack.c.l.b16 %v531
        %v622 = vunpack.c.l.b16 %v532
        %v623 = vunpack.c.h.b16 %v532
        %v624 = vunpack.c.l.b16 %v533
        %v625 = vunpack.c.l.b16 %v534
        %v626 = vunpack.c.h.b16 %v534
        %v627 = vunpack.c.l.b16 %v535
        %v628 = vunpack.c.l.b16 %v536
        %v629 = vunpack.c.h.b16 %v536
        %v630 = vunpack.c.l.b16 %v537
        %v631 = vunpack.c.l.b16 %v538
        %v632 = vunpack.c.h.b16 %v538
        %v633 = vunpack.c.l.b16 %v539
        %v634 = vunpack.c.l.b16 %v540
        %v635 = vunpack.c.h.b16 %v540
        %v636 = vunpack.c.l.b16 %v541
        %v637 = vunpack.c.l.b16 %v542
        %v638 = vunpack.c.h.b16 %v542
        %v639 = vunpack.c.l.b16 %v543
        %v640 = vunpack.c.l.b16 %v544
        %v641 = vunpack.c.h.b16 %v544
        %v642 = vunpack.c.l.b16 %v545
        %v643 = vunpack.c.l.b16 %v546
        %v644 = vunpack.c.h.b16 %v546
        %v645 = vunpack.c.l.b16 %v547
        %v646 = vunpack.c.l.b16 %v548
        %v647 = vunpack.c.h.b16 %v548
        %v648 = vunpack.c.l.b16 %v549
        %v649 = vunpack.c.l.b16 %v550
        %v650 = vunpack.c.h.b16 %v550
        %v651 = vunpack.c.l.b16 %v551
        %v652 = vunpack.c.l.b16 %v552
        %v653 = vunpack.c.h.b16 %v552
        %v654 = vunpack.c.l.b16 %v553
        %v655 = vunpack.c.l.b16 %v554
        %v656 = vunpack.c.h.b16 %v554
        %v657 = vunpack.c.l.b16 %v555
        %v658 = vpack.c.b16 %v607, %v604
        %v659 = vpack.c.b16 %v608, %v605
        %v660 = vpack.c.b16 %v609, %v606
        %v661 = vpack.c.b16 %v613, %v610
        %v662 = vpack.c.b16 %v614, %v611
        %v663 = vpack.c.b16 %v615, %v612
        %v664 = vpack.c.b16 %v619, %v616
        %v665 = vpack.c.b16 %v620, %v617
        %v666 = vpack.c.b16 %v621, %v618
        %v667 = vpack.c.b16 %v625, %v622
        %v668 = vpack.c.b16 %v626, %v623
        %v669 = vpack.c.b16 %v627, %v624
        %v670 = vpack.c.b16 %v631, %v628
        %v671 = vpack.c.b16 %v632, %v629
        %v672 = vpack.c.b16 %v633, %v630
        %v673 = vpack.c.b16 %v637, %v634
        %v674 = vpack.c.b16 %v638, %v635
        %v675 = vpack.c.b16 %v639, %v636
        %v676 = vpack.c.b16 %v643, %v640
        %v677 = vpack.c.b16 %v644, %v641
        %v678 = vpack.c.b16 %v645, %v642
        %v679 = vpack.c.b16 %v649, %v646
        %v680 = vpack.c.b16 %v650, %v647
        %v681 = vpack.c.b16 %v651, %v648
        %v682 = vpack.c.b16 %v655, %v652
        %v683 = vpack.c.b16 %v656, %v653
        %v684 = vpack.c.b16 %v657, %v654
        %vm712 = vcmask 130048
        %v714 = vsel %vm712, %v566, 0
        %716 = vmatprep.subr.bf16.mxu0 %v680
        %717 = vmatpush1.bf16.msra.mxu0 %v679
        %718 = vmatprep.subr.bf16.mxu0 %v677
        %719 = vmatpush1.bf16.msra.mxu0 %v676
        %720 = vmatprep.subr.bf16.mxu0 %v674
        %721 = vmatpush1.bf16.msra.mxu0 %v673
        %722 = vmatprep.subr.bf16.mxu0 %v671
        %723 = vmatpush1.bf16.msra.mxu0 %v670
        %724 = vmatprep.subr.bf16.mxu0 %v668
        %725 = vmatpush1.bf16.msra.mxu0 %v667
        %726 = vmatprep.subr.bf16.mxu0 %v665
        %727 = vmatpush1.bf16.msra.mxu0 %v664
        %728 = vmatprep.subr.bf16.mxu0 %v662
        %729 = vmatpush1.bf16.msra.mxu0 %v661
        %730 = vmatprep.subr.bf16.mxu0 %v659
        %731 = vmatpush1.bf16.msra.mxu0 %v658
        %732 = vmatprep.subr.bf16.mxu0 0
        %733 = vmatpush2.bf16.msra.mxu0 0
        %734 = vmatprep.subr.bf16.mxu0 0
        %735 = vmatpush2.bf16.msra.mxu0 0
        %736 = vmatprep.subr.bf16.mxu0 0
        %737 = vmatpush2.bf16.msra.mxu0 0
        %738 = vmatprep.subr.bf16.mxu0 0
        %739 = vmatpush2.bf16.msra.mxu0 0
        %740 = vmatprep.subr.bf16.mxu0 0
        %741 = vmatpush2.bf16.msra.mxu0 0
        %742 = vmatprep.subr.bf16.mxu0 0
        %743 = vmatpush2.bf16.msra.mxu0 0
        %744 = vmatprep.subr.bf16.mxu0 0
        %745 = vmatpush2.bf16.msra.mxu0 0
        %746 = vmatprep.subr.bf16.mxu0 %v683
        %747 = vmatpush2.bf16.msra.mxu0 %v682
        %748 = vmatprep.mubr.bf16.mxu0 %v714
        %749 = vmatmul.mubr.bf16.gmra.mxu0 %v565
        %v750 = vpop.f32.mrf.mxu0
        %v751 = vadd.f32 %v560, %v750
        %v752 = vpop.f32.mrf.mxu0
        %v753 = vadd.f32 %v560, %v752
        %v754 = vpop.f32.mrf.mxu0
        %v755 = vpop.f32.mrf.mxu0
        %756 = vdwg.mxu0
        %757 = vmatprep.subr.bf16.mxu0 0
        %758 = vmatpush1.bf16.msra.mxu0 %v681
        %759 = vmatprep.subr.bf16.mxu0 0
        %760 = vmatpush1.bf16.msra.mxu0 %v678
        %761 = vmatprep.subr.bf16.mxu0 0
        %762 = vmatpush1.bf16.msra.mxu0 %v675
        %763 = vmatprep.subr.bf16.mxu0 0
        %764 = vmatpush1.bf16.msra.mxu0 %v672
        %765 = vmatprep.subr.bf16.mxu0 0
        %766 = vmatpush1.bf16.msra.mxu0 %v669
        %767 = vmatprep.subr.bf16.mxu0 0
        %768 = vmatpush1.bf16.msra.mxu0 %v666
        %769 = vmatprep.subr.bf16.mxu0 0
        %770 = vmatpush1.bf16.msra.mxu0 %v663
        %771 = vmatprep.subr.bf16.mxu0 0
        %772 = vmatpush1.bf16.msra.mxu0 %v660
        %773 = vmatprep.subr.bf16.mxu0 0
        %774 = vmatpush2.bf16.msra.mxu0 0
        %775 = vmatprep.subr.bf16.mxu0 0
        %776 = vmatpush2.bf16.msra.mxu0 0
        %777 = vmatprep.subr.bf16.mxu0 0
        %778 = vmatpush2.bf16.msra.mxu0 0
        %779 = vmatprep.subr.bf16.mxu0 0
        %780 = vmatpush2.bf16.msra.mxu0 0
        %781 = vmatprep.subr.bf16.mxu0 0
        %782 = vmatpush2.bf16.msra.mxu0 0
        %783 = vmatprep.subr.bf16.mxu0 0
        %784 = vmatpush2.bf16.msra.mxu0 0
        %785 = vmatprep.subr.bf16.mxu0 0
        %786 = vmatpush2.bf16.msra.mxu0 0
        %787 = vmatprep.subr.bf16.mxu0 0
        %788 = vmatpush2.bf16.msra.mxu0 %v684
        %789 = vmatprep.mubr.bf16.mxu0 %v714
        %790 = vmatmul.mubr.bf16.gmra.mxu0 %v565
        %v791 = vpop.f32.mrf.mxu0
        %v792 = vadd.f32 %v560, %v791
        %v793 = vpop.f32.mrf.mxu0
        %v794 = vpop.f32.mrf.mxu0
        %v795 = vpop.f32.mrf.mxu0
        %796 = vdwg.mxu0
        %797 = vst [vmem:[%s230] sm:$0xff] %v751
        %798 = vst [vmem:[%s230 + $0x8] sm:$0xff] %v753
        %vm799 = vcmask 261120
        %800 = vst.msk [vmem:[%s230 + $0x10] sm:$0xff] %vm799, %v792
        %s801 = sand.u32 %s120, 1
        %s802 = scalar_lea.sflag [#allocation5], %s801
        %s803 = sand.u32 %s120, 1
        %s804 = smul.addr %s803, 24
        %s805 = scalar_lea.vmem [#allocation6], %s804
        // Predicated region
        $region41: #{tpu_custom_call.1} parent=31 // pred_check
          %p806 = pneg %p130
        $region42: #{tpu_custom_call.1} parent=31 // pred_check_branch
          %808 = sbr.rel (%p806) target = $region44
        $region43: #{tpu_custom_call.1} parent=31 // pred_region
          %s810 = ssub.s32 384, 384
          %811 = vsyncadd %s802, %s810
          %s812 = smul.addr %s25, 3
          %s813 = smul.addr %s24, 3
          %s814 = sadd.s32 %s812, %s813
          %s815 = smul.addr %s814, 128
          %s816 = scalar_lea.hbm %s3, %s815
          %s818 = sshll.u32 %s805, 4
          %s819 = int_to_ptr.vmem [resolvable:$true] %s818
          %821 = dma.vmem_to_hbm [thread:$0]  %s819, 384, %s816, %s802
        $region44: #{tpu_custom_call.1} parent=31 // pred_fallthru
          _
      $region32: #{tpu_custom_call.1} parent=5 // pred_fallthru
        _
      %p822 = scmp.le.s32.totalorder 2, %s15
      // Predicated region
      $region45: #{tpu_custom_call.1} parent=5 // pred_check
        %p823 = pneg %p822
      $region46: #{tpu_custom_call.1} parent=5 // pred_check_branch
        %825 = sbr.rel (%p823) target = $region48
      $region47: #{tpu_custom_call.1} parent=5 // pred_region
        %s826 = ssub.s32 %s15, 2
        // Predicated region
        $region49: #{tpu_custom_call.1} parent=47 // pred_check
          %p827 = pneg %p136
        $region50: #{tpu_custom_call.1} parent=47 // pred_check_branch
          %829 = sbr.rel (%p827) target = $region52
        $region51: #{tpu_custom_call.1} parent=47 // pred_region
          %s830 = sand.u32 %s121, 1
          %s831 = scalar_lea.sflag [#allocation5], %s830
          %s832 = sand.u32 %s121, 1
          %s833 = smul.addr %s832, 24
          %s834 = scalar_lea.vmem [#allocation6], %s833
          %835 = dma.done %s831, 384
        $region52: #{tpu_custom_call.1} parent=47 // pred_fallthru
          _
      $region48: #{tpu_custom_call.1} parent=5 // pred_fallthru
        _
    $region6: #{tpu_custom_call.1} parent=1 // loop_footer
      %s19 = sadd.s32 1, %s15
    $region7: #{tpu_custom_call.1} parent=1 // loop_footer_branch
      %14 = sbr.rel target = $region3
    $region8: #{tpu_custom_call.1} parent=1 // loop_exit
      _
    %836 = vsyncpa [#allocation4], 1
    %s837 = scalar_lea.sflag [#allocation4], 1
    %838 = vsyncpa %s837, 1
    %839 = vsyncpa [#allocation5], 1
    %s840 = scalar_lea.sflag [#allocation5], 1
    %841 = vsyncpa %s840, 1

</llo_original>
